<compile_context>
chip_gen: v7x
topology: tpu7x:2x2x1
jax: 0.10.0
libtpu: 0.0.40
codegen_flags: <defaults>
</compile_context>

<pallas_src>
import math
import functools

import jax
import jax.numpy as jnp
from jax import lax
from jax.experimental import pallas as pl
from jax.experimental.pallas import tpu as pltpu


# ---------------------------------------------------------------------------
# helpers
# ---------------------------------------------------------------------------
def _vmem_limit_bytes(block_bytes):
    """Scoped-VMEM limit: double-buffered blocks + headroom, <= ~75% physical."""
    try:
        cap = int(pltpu.get_tpu_info().vmem_capacity_bytes)
    except Exception:
        cap = 64 << 20                       # conservative (v7x: 64 MiB per TC)
    want = 4 * int(block_bytes) + (16 << 20)
    return int(min(max(want, 32 << 20), (3 * cap) // 4))


def _cumsum_rows_f32(x):
    """Inclusive prefix-sum along axis 0 (sublanes): log-step shift+add, f32."""
    n, d = x.shape
    acc = x
    shift = 1
    while shift < n:
        shifted = jnp.concatenate(
            [jnp.zeros((shift, d), acc.dtype), acc[:n - shift, :]], axis=0)
        acc = acc + shifted
        shift *= 2
    return acc


# ---------------------------------------------------------------------------
# kernel 1: _prob_QK sparsity measure M (replaces the HBM K_sample gather)
# ---------------------------------------------------------------------------
def _prob_m_kernel(q_ref, k_ref, smask_ref, scount_ref, m_ref, *, inv_lk):
    # q_ref:      (1, H, L_Q, D) bf16
    # k_ref:      (1, H, L_K, D) bf16
    # smask_ref:  (L_Q, L_K) f32  additive mask: 0 where key sampled, -1e30 else
    # scount_ref: (L_Q, L_K) f32  sample multiplicity per (query, key)
    # m_ref:      (1, H, L_Q, 1) f32  M = max_s(QK_s) - sum_s(QK_s) / L_K
    q = q_ref[0]                              # (H, L_Q, D)
    k = k_ref[0]                              # (H, L_K, D)
    # all heads in one batched MXU call (bf16 operands, f32 accumulation)
    s = lax.dot_general(q, k, (((2,), (2,)), ((0,), (0,))),
                        preferred_element_type=jnp.float32)      # (H, L_Q, L_K)
    smask = smask_ref[...][None]              # (1, L_Q, L_K)
    scount = scount_ref[...][None]            # (1, L_Q, L_K)
    m_max = jnp.max(s + smask, axis=-1, keepdims=True)           # (H, L_Q, 1)
    m_mean = jnp.sum(s * scount, axis=-1, keepdims=True) * inv_lk
    m_ref[0] = (m_max - m_mean).astype(m_ref.dtype)


def _prob_m_pallas(Qb, Kb, smask, scount):
    B, H, L_Q, D = Qb.shape
    L_K = Kb.shape[2]

    kernel = functools.partial(_prob_m_kernel, inv_lk=1.0 / L_K)

    block_bytes = H * L_Q * D * 2 + H * L_K * D * 2 + 2 * L_Q * L_K * 4 + H * L_Q * 4
    flops = int(B * H * (2 * L_Q * L_K * D + 4 * L_Q * L_K))
    bytes_accessed = int(B * H * (L_Q + L_K) * D * 2
                         + 2 * L_Q * L_K * 4 + B * H * L_Q * 4)

    return pl.pallas_call(
        kernel,
        out_shape=jax.ShapeDtypeStruct((B, H, L_Q, 1), jnp.float32),
        grid=(B,),
        in_specs=[
            pl.BlockSpec((1, H, L_Q, D), lambda b: (b, 0, 0, 0)),   # Q
            pl.BlockSpec((1, H, L_K, D), lambda b: (b, 0, 0, 0)),   # K
            pl.BlockSpec((L_Q, L_K), lambda b: (0, 0)),   # fetched once, reused
            pl.BlockSpec((L_Q, L_K), lambda b: (0, 0)),
        ],
        out_specs=pl.BlockSpec((1, H, L_Q, 1), lambda b: (b, 0, 0, 0)),
        compiler_params=pltpu.CompilerParams(
            dimension_semantics=("parallel",),
            vmem_limit_bytes=_vmem_limit_bytes(block_bytes)),
        cost_estimate=pl.CostEstimate(flops=flops, transcendentals=0,
                                      bytes_accessed=bytes_accessed),
    )(Qb, Kb, smask, scount)


# ---------------------------------------------------------------------------
# kernel 2: masked softmax + attn@V + in-kernel cumsum(V) + scatter
# ---------------------------------------------------------------------------
def _attn_scatter_kernel(qr_ref, k_ref, v_ref, idxc_ref, idxr_ref, ctx_ref, *,
                         scale, u_valid, heads_per_step):
    # qr_ref:   (1, hg, u_pad, D)  bf16  gathered (padded) top-u queries
    # k_ref:    (1, hg, L_K, D)    bf16  keys
    # v_ref:    (1, hg, L_K, D)    bf16  values
    # idxc_ref: (1, hg, u_pad, 1)  int32 top-u positions (column layout)
    # idxr_ref: (1, hg, 1, u_pad)  int32 top-u positions (row layout)
    # ctx_ref:  (1, L_Q, hg*D)     f32   output slab for this head-group
    hg = heads_per_step
    u_pad = qr_ref.shape[2]
    L_K = k_ref.shape[2]
    L_Q = ctx_ref.shape[1]

    q = qr_ref[0]                 # (hg, u_pad, D) bf16
    k = k_ref[0]                  # (hg, L_K, D)   bf16
    v = v_ref[0]                  # (hg, L_K, D)   bf16
    idxc = idxc_ref[0]            # (hg, u_pad, 1) int32

    # scores for selected queries vs all keys, batched over the head group
    # (bf16 MXU operands, f32 accumulation; D contracted -- no K transpose)
    scores = lax.dot_general(q, k, (((2,), (2,)), ((0,), (0,))),
                             preferred_element_type=jnp.float32) * scale

    # ProbMask rebuilt in-kernel: mask[h, i, kk] = kk > index[h, i].
    # (Padded rows carry index L_K-1 -> nothing masked -> no NaN.)
    k_iota = lax.broadcasted_iota(jnp.int32, (hg, u_pad, L_K), 2)
    scores = jnp.where(k_iota > idxc, -jnp.inf, scores)

    # softmax along keys (f32); the divide goes to the EUP reciprocal slot.
    smax = jnp.max(scores, axis=-1, keepdims=True)
    e = jnp.exp(scores - smax)
    denom = jnp.sum(e, axis=-1, keepdims=True)
    attn = e * pl.reciprocal(denom, approx=True)

    # attended output for the selected queries (bf16 MXU, f32 accumulate)
    outv = lax.dot_general(attn.astype(v.dtype), v, (((2,), (1,)), ((0,), (0,))),
                           preferred_element_type=jnp.float32)   # (hg, u_pad, D)
    outv_bf = outv.astype(jnp.bfloat16)

    # head-group shared index grids
    l_iota = lax.broadcasted_iota(jnp.int32, (L_Q, u_pad), 0)
    col_valid = lax.broadcasted_iota(jnp.int32, (L_Q, u_pad), 1) < u_valid

    pieces = []
    for h in range(hg):           # hg = ceil(128/D): live ranges stay bounded
        # initial context = cumsum(V), computed from the already-resident bf16
        # V block with f32 accumulation -- no f32 ctx0 HBM input any more.
        ctx0_h = _cumsum_rows_f32(v[h].astype(jnp.float32))      # (L_K==L_Q, D)

        # scatter one-hot rebuilt in-kernel: sel[l, i] = (index[i] == l),
        # with padded columns (i >= u_valid) removed.
        sel = jnp.logical_and(l_iota == idxr_ref[0, h], col_valid)
        sel_bf = sel.astype(jnp.float32).astype(jnp.bfloat16)    # exact 0/1
        # one-hot scatter as a bf16 MXU matmul (exact for one-hot rows)
        scattered = jnp.dot(sel_bf, outv_bf[h],
                            preferred_element_type=jnp.float32)  # (L_Q, D)
        # or-reduce over the one-hot row in integer form (cheap VPU path,
        # no f32 lane reduction)
        hit = jnp.max(sel.astype(jnp.int32), axis=-1, keepdims=True) > 0
        pieces.append(jnp.where(hit, scattered, ctx0_h))

    slab = pieces[0] if hg == 1 else jnp.concatenate(pieces, axis=-1)
    ctx_ref[0] = slab.astype(ctx_ref.dtype)   # one lane-dense (L_Q, hg*D) store


def _attention_pallas(q_reduce, K, V, idx_col, idx_row, scale, u_valid):
    B, H, u_pad, D = q_reduce.shape
    L_K = K.shape[2]
    L_Q = L_K                     # mask_flag=True path (cumsum initial context)

    # heads per grid step so each output store is ~128 lanes (unmasked vst)
    hg = min(H, max(1, -(-128 // D)))
    while H % hg:
        hg -= 1
    if (hg * D) % 128 != 0 and hg != H:
        hg = H                    # fall back to one full-width group
    G = H // hg

    kernel = functools.partial(_attn_scatter_kernel, scale=scale,
                               u_valid=u_valid, heads_per_step=hg)

    block_bytes = (hg * u_pad * D * 2 + 2 * hg * L_K * D * 2
                   + 2 * hg * u_pad * 4 + L_Q * hg * D * 4)
    log2_l = max(1, math.ceil(math.log2(L_K)))
    flops = int(B * H * (4 * u_pad * L_K * D + 2 * L_Q * u_pad * D
                         + L_Q * D * log2_l))
    transcendentals = int(B * H * u_pad * (L_K + 1))
    bytes_accessed = int(B * H * (u_pad * D * 2 + 2 * L_K * D * 2 + 2 * u_pad * 4)
                         + B * L_Q * H * D * 4)

    # TODO(synk): for very long sequences (L >~ 2-4K) add an 'arbitrary' grid
    # axis tiling the L_Q rows of the output/scatter so the blocks stay inside
    # v7x's 64 MiB VMEM while keeping K/V full length.
    return pl.pallas_call(
        kernel,
        out_shape=jax.ShapeDtypeStruct((B, L_Q, H * D), jnp.float32),
        grid=(B, G),
        in_specs=[
            pl.BlockSpec((1, hg, u_pad, D), lambda b, g: (b, g, 0, 0)),  # Q_reduce
            pl.BlockSpec((1, hg, L_K, D), lambda b, g: (b, g, 0, 0)),    # K
            pl.BlockSpec((1, hg, L_K, D), lambda b, g: (b, g, 0, 0)),    # V
            pl.BlockSpec((1, hg, u_pad, 1), lambda b, g: (b, g, 0, 0)),  # idx col
            pl.BlockSpec((1, hg, 1, u_pad), lambda b, g: (b, g, 0, 0)),  # idx row
        ],
        out_specs=pl.BlockSpec((1, L_Q, hg * D), lambda b, g: (b, 0, g)),
        compiler_params=pltpu.CompilerParams(
            dimension_semantics=("parallel", "parallel"),
            vmem_limit_bytes=_vmem_limit_bytes(block_bytes)),
        cost_estimate=pl.CostEstimate(flops=flops,
                                      transcendentals=transcendentals,
                                      bytes_accessed=bytes_accessed),
    )(q_reduce, K, V, idx_col, idx_row)


# ---------------------------------------------------------------------------
# ProbAttention.forward (mask_flag=True, output_attention=False)
# ---------------------------------------------------------------------------
def prob_attention_forward(queries, keys, values, attn_mask=None, *,
                           factor=5, scale=None, sample_key=None):
    B, L_Q, H, D = queries.shape
    _, L_K, _, _ = keys.shape

    Q = jnp.transpose(queries, (0, 2, 1, 3))   # (B, H, L_Q, D)
    K = jnp.transpose(keys, (0, 2, 1, 3))      # (B, H, L_K, D)
    V = jnp.transpose(values, (0, 2, 1, 3))    # (B, H, L_K, D)

    U_part = min(int(factor * math.ceil(math.log(L_K))), L_K)
    u = min(int(factor * math.ceil(math.log(L_Q))), L_Q)

    if sample_key is None:
        sample_key = jax.random.PRNGKey(42)
    index_sample = jax.random.randint(sample_key, (L_Q, U_part), 0, L_K)

    # Encode the random sample as dense per-query key-count / additive-mask
    # matrices (batch/head independent, fetched into VMEM once by kernel 1):
    # this replaces the huge HBM K_sample gather of the reference module.
    row = jnp.arange(L_Q)[:, None]
    scount = jnp.zeros((L_Q, L_K), jnp.float32).at[row, index_sample].add(1.0)
    smask = jnp.where(scount > 0.0, 0.0, -1e30).astype(jnp.float32)

    Qb = Q.astype(jnp.bfloat16)
    Kb = K.astype(jnp.bfloat16)
    Vb = V.astype(jnp.bfloat16)

    # --- kernel 1: sparsity measure M (the _prob_QK sampling stage) ---------
    M = _prob_m_pallas(Qb, Kb, smask, scount)[..., 0]            # (B, H, L_Q)

    # top-u queries + their gathered rows (tiny arrays, stays in XLA)
    M_top = lax.top_k(M, u)[1].astype(jnp.int32)                 # (B, H, u)
    Q_reduce = jnp.take_along_axis(Q, M_top[..., None], axis=2)  # (B, H, u, D)

    scale_v = float(scale) if scale is not None else 1.0 / math.sqrt(D)

    # mask_flag=True path requires L_Q == L_K (cumsum initial context)
    assert L_Q == L_K
    # TODO(synk): mask_flag=False (mean initial context) branch not implemented.

    # Pad u to a multiple of 16 (clean sublane tiles).  Padded query rows are
    # zeros; padded indices point at L_K-1 (nothing masked -> no NaN) and the
    # in-kernel static column-valid mask (u_valid=u) keeps them out of the
    # scatter -- these two stay in sync via u_valid below.
    u_pad = max(16, -(-u // 16) * 16)
    if u_pad > u:
        Q_reduce = jnp.pad(Q_reduce, ((0, 0), (0, 0), (0, u_pad - u), (0, 0)))
        M_top_p = jnp.pad(M_top, ((0, 0), (0, 0), (0, u_pad - u)),
                          constant_values=L_K - 1)
    else:
        M_top_p = M_top

    idx_col = M_top_p[..., None]                   # (B, H, u_pad, 1)
    idx_row = M_top_p[:, :, None, :]               # (B, H, 1, u_pad)

    # --- kernel 2: masked softmax + attn@V + in-kernel cumsum + scatter -----
    ctx_slab = _attention_pallas(Q_reduce.astype(jnp.bfloat16), Kb, Vb,
                                 idx_col, idx_row, scale_v, u)

    context = ctx_slab.reshape(B, L_Q, H, D)       # lane-dense slab -> (B,L,H,D)
    return context, None   # output_attention=False; nn.Dropout unused in forward


# ---------------------------------------------------------------------------
# Pure-JAX reference (mirrors the torch code; bf16 MXU operand precision and
# a bf16-sourced cumsum so the comparison is apples-to-apples with the kernel)
# ---------------------------------------------------------------------------
def prob_attention_reference(queries, keys, values, index_sample, *,
                             factor=5, scale=None):
    B, L_Q, H, D = queries.shape
    _, L_K, _, _ = keys.shape
    Q = jnp.transpose(queries, (0, 2, 1, 3))
    K = jnp.transpose(keys, (0, 2, 1, 3))
    V = jnp.transpose(values, (0, 2, 1, 3))

    u = min(int(factor * math.ceil(math.log(L_Q))), L_Q)

    Qb = Q.astype(jnp.bfloat16)
    Kb = K.astype(jnp.bfloat16)
    Vb = V.astype(jnp.bfloat16)

    K_sample = Kb[:, :, index_sample, :]                           # (B,H,L_Q,U,D)
    Q_K_sample = jnp.einsum('bhqd,bhqsd->bhqs', Qb, K_sample,
                            preferred_element_type=jnp.float32)
    M = Q_K_sample.max(-1) - Q_K_sample.sum(-1) / L_K
    M_top = lax.top_k(M, u)[1]
    Q_reduce = jnp.take_along_axis(Q, M_top[..., None], axis=2)

    scale_v = scale if scale is not None else 1.0 / math.sqrt(D)
    scores = jnp.einsum('bhud,bhkd->bhuk',
                        Q_reduce.astype(jnp.bfloat16), Kb,
                        preferred_element_type=jnp.float32) * scale_v
    mask = jnp.arange(L_K)[None, None, None, :] > M_top[..., None]
    scores = jnp.where(mask, -jnp.inf, scores)
    attn = jax.nn.softmax(scores, axis=-1)
    out = jnp.einsum('bhuk,bhkd->bhud',
                     attn.astype(jnp.bfloat16), Vb,
                     preferred_element_type=jnp.float32)

    ctx = jnp.cumsum(Vb.astype(jnp.float32), axis=2)
    b_idx = jnp.arange(B)[:, None, None]
    h_idx = jnp.arange(H)[None, :, None]
    ctx = ctx.at[b_idx, h_idx, M_top].set(out)
    return jnp.transpose(ctx, (0, 2, 1, 3))


if __name__ == "__main__":
    key = jax.random.PRNGKey(0)
    kq, kk, kv, ks = jax.random.split(key, 4)

    # Small shapes; factor=5 so the ProbSparse selection is actually active:
    # u = U_part = 5 * ceil(ln(64)) = 25 < 64 (padded to 32 inside the wrapper).
    # H*D = 256 -> two 128-lane head-group output stores per batch item.
    B, L, H, D = 2, 64, 4, 64
    factor = 5

    q = jax.random.normal(kq, (B, L, H, D), dtype=jnp.float32)
    k = jax.random.normal(kk, (B, L, H, D), dtype=jnp.float32)
    v = jax.random.normal(kv, (B, L, H, D), dtype=jnp.float32)

    context, attn = prob_attention_forward(q, k, v, factor=factor, sample_key=ks)
    context = jax.block_until_ready(context)
    assert context.shape == (B, L, H, D)
    assert not bool(jnp.any(jnp.isnan(context)))

    # verify against the pure-JAX reference (same deterministic sample indices)
    U_part = min(int(factor * math.ceil(math.log(L))), L)
    index_sample = jax.random.randint(ks, (L, U_part), 0, L)
    ref = prob_attention_reference(q, k, v, index_sample, factor=factor)
    assert jnp.allclose(context, ref, atol=1e-2, rtol=1e-2), "mismatch vs reference"

    print("KERNEL_OK")
</pallas_src>

<mosaic_0001>
module attributes {stable_mosaic.version = 11 : i64} {
  func.func @_prob_m_kernel(%arg0: i32, %arg1: memref<1x4x64x64xbf16, #tpu.memory_space<vmem>>, %arg2: memref<1x4x64x64xbf16, #tpu.memory_space<vmem>>, %arg3: memref<64x64xf32, #tpu.memory_space<vmem>>, %arg4: memref<64x64xf32, #tpu.memory_space<vmem>>, %arg5: memref<1x4x64x1xf32, #tpu.memory_space<vmem>>) attributes {dimension_semantics = [#tpu.dimension_semantics<parallel>], iteration_bounds = array<i64: 2>, scalar_prefetch = 0 : i64, scratch_operands = 0 : i64, tpu.core_type = #tpu.core_type<tc>, window_params = [{transform_indices = @transform_0, window_bounds = array<i64: 1, 4, 64, 64>}, {transform_indices = @transform_1, window_bounds = array<i64: 1, 4, 64, 64>}, {pipeline_mode = #tpu.pipeline_mode<synchronous>, transform_indices = @transform_2, window_bounds = array<i64: 64, 64>}, {pipeline_mode = #tpu.pipeline_mode<synchronous>, transform_indices = @transform_3, window_bounds = array<i64: 64, 64>}, {transform_indices = @transform_4, window_bounds = array<i64: 1, 4, 64, 1>}]} {
    %c0 = arith.constant 0 : index
    %c0_0 = arith.constant 0 : index
    %c0_1 = arith.constant 0 : index
    %c0_2 = arith.constant 0 : index
    %0 = vector.load %arg1[%c0, %c0_0, %c0_1, %c0_2] : memref<1x4x64x64xbf16, #tpu.memory_space<vmem>>, vector<1x4x64x64xbf16>
    %1 = vector.shape_cast %0 : vector<1x4x64x64xbf16> to vector<4x64x64xbf16>
    %c0_3 = arith.constant 0 : index
    %c0_4 = arith.constant 0 : index
    %c0_5 = arith.constant 0 : index
    %c0_6 = arith.constant 0 : index
    %2 = vector.load %arg2[%c0_3, %c0_4, %c0_5, %c0_6] : memref<1x4x64x64xbf16, #tpu.memory_space<vmem>>, vector<1x4x64x64xbf16>
    %3 = vector.shape_cast %2 : vector<1x4x64x64xbf16> to vector<4x64x64xbf16>
    %cst = arith.constant dense<0.000000e+00> : vector<4x64x64xf32>
    %4 = tpu.matmul %1, %3, %cst {dimension_numbers = #tpu.dot_dimension_numbers<[2], [2], [1], [1], [0, 0, 0, 1, 1, 1], [0], [0]>} : vector<4x64x64xbf16>, vector<4x64x64xbf16>, vector<4x64x64xf32> -> vector<4x64x64xf32>
    %c0_7 = arith.constant 0 : index
    %c0_8 = arith.constant 0 : index
    %5 = vector.load %arg3[%c0_7, %c0_8] : memref<64x64xf32, #tpu.memory_space<vmem>>, vector<64x64xf32>
    %6 = vector.shape_cast %5 : vector<64x64xf32> to vector<1x64x64xf32>
    %c0_9 = arith.constant 0 : index
    %c0_10 = arith.constant 0 : index
    %7 = vector.load %arg4[%c0_9, %c0_10] : memref<64x64xf32, #tpu.memory_space<vmem>>, vector<64x64xf32>
    %8 = vector.shape_cast %7 : vector<64x64xf32> to vector<1x64x64xf32>
    %9 = vector.broadcast %6 : vector<1x64x64xf32> to vector<4x64x64xf32>
    %10 = arith.addf %4, %9 : vector<4x64x64xf32>
    %cst_11 = arith.constant dense<0xFF800000> : vector<4x64xf32>
    %11 = vector.multi_reduction <maximumf>, %10, %cst_11 [2] : vector<4x64x64xf32> to vector<4x64xf32>
    %12 = vector.shape_cast %11 : vector<4x64xf32> to vector<4x64x1xf32>
    %13 = vector.broadcast %8 : vector<1x64x64xf32> to vector<4x64x64xf32>
    %14 = arith.mulf %4, %13 : vector<4x64x64xf32>
    %cst_12 = arith.constant dense<0.000000e+00> : vector<4x64xf32>
    %15 = vector.multi_reduction <add>, %14, %cst_12 [2] : vector<4x64x64xf32> to vector<4x64xf32>
    %16 = vector.shape_cast %15 : vector<4x64xf32> to vector<4x64x1xf32>
    %cst_13 = arith.constant 1.562500e-02 : f32
    %17 = vector.broadcast %cst_13 : f32 to vector<4x64x1xf32>
    %18 = arith.mulf %16, %17 : vector<4x64x1xf32>
    %19 = arith.subf %12, %18 : vector<4x64x1xf32>
    %c0_14 = arith.constant 0 : index
    %c0_15 = arith.constant 0 : index
    %c0_16 = arith.constant 0 : index
    %c0_17 = arith.constant 0 : index
    %20 = vector.load %arg5[%c0_14, %c0_15, %c0_16, %c0_17] : memref<1x4x64x1xf32, #tpu.memory_space<vmem>>, vector<1x4x64x1xf32>
    %21 = vector.shape_cast %20 : vector<1x4x64x1xf32> to vector<4x64x1xf32>
    %22 = vector.shape_cast %19 : vector<4x64x1xf32> to vector<1x4x64x1xf32>
    tpu.vector_store %arg5[%c0_14, %c0_15, %c0_16, %c0_17], %22 {strides = array<i32>} : memref<1x4x64x1xf32, #tpu.memory_space<vmem>>, vector<1x4x64x1xf32>,
    return
  }
  func.func @transform_0(%arg0: i32) -> (i32, i32, i32, i32) {
    %c0_i32 = arith.constant 0 : i32
    %c0_i32_0 = arith.constant 0 : i32
    %c0_i32_1 = arith.constant 0 : i32
    %c0_i32_2 = arith.constant 0 : i32
    return %arg0, %c0_i32, %c0_i32_0, %c0_i32_1 : i32, i32, i32, i32
  }
  func.func @transform_1(%arg0: i32) -> (i32, i32, i32, i32) {
    %c0_i32 = arith.constant 0 : i32
    %c0_i32_0 = arith.constant 0 : i32
    %c0_i32_1 = arith.constant 0 : i32
    %c0_i32_2 = arith.constant 0 : i32
    return %arg0, %c0_i32, %c0_i32_0, %c0_i32_1 : i32, i32, i32, i32
  }
  func.func @transform_2(%arg0: i32) -> (i32, i32) {
    %c0_i32 = arith.constant 0 : i32
    %c0_i32_0 = arith.constant 0 : i32
    %c0_i32_1 = arith.constant 0 : i32
    return %c0_i32, %c0_i32_0 : i32, i32
  }
  func.func @transform_3(%arg0: i32) -> (i32, i32) {
    %c0_i32 = arith.constant 0 : i32
    %c0_i32_0 = arith.constant 0 : i32
    %c0_i32_1 = arith.constant 0 : i32
    return %c0_i32, %c0_i32_0 : i32, i32
  }
  func.func @transform_4(%arg0: i32) -> (i32, i32, i32, i32) {
    %c0_i32 = arith.constant 0 : i32
    %c0_i32_0 = arith.constant 0 : i32
    %c0_i32_1 = arith.constant 0 : i32
    %c0_i32_2 = arith.constant 0 : i32
    return %arg0, %c0_i32, %c0_i32_0, %c0_i32_1 : i32, i32, i32, i32
  }
}

</mosaic_0001>

<llo_original>
// kernel: tpu_custom_call.1
$region0: #{tpu_custom_call.1}
  #allocation0 [shape = 'u32[]', space=smem, size = 0x4, offset = 0x4, fixed_abs, tag = 'smem constant byte address 0x4 - core index']
  #allocation1 [shape = 'u32[144,128]{1,0:T(1,128)}', space=vmem, size = 0x12000, scoped, tag = 'internal scratch']
  %s0 = inlined_call_operand.hbm [shape: bf16[2,4,64,64], index: 0, kind: input, shape index: {}]
  %s1 = inlined_call_operand.hbm [shape: bf16[2,4,64,64], index: 1, kind: input, shape index: {}]
  %s2 = inlined_call_operand.hbm [shape: f32[64,64], index: 2, kind: input, shape index: {}]
  %s3 = inlined_call_operand.hbm [shape: f32[64,64], index: 3, kind: input, shape index: {}]
  %s4 = inlined_call_operand.vmem [shape: f32[2,4,64,1], index: 4, kind: output, shape index: {}]
  %s5 = sld [smem:[#allocation0]]
  $region65: #{tpu_custom_call.1} parent=0
    _
  %s7 = ssub.s32 1, %s5
  %s8 = scalar_select 0, %s7, %s5
  $region1: #{tpu_custom_call.1} parent=0
    #allocation2 [shape = 'u8[131072]{0}', space=vmem, size = 0x20000, scoped, tag = 'input window, operand 0']
    #allocation3 [shape = 's32[2]{0}', space=sflag, size = 0x8, scoped, tag = 'scoped memory for tpu_custom_call.1']
    #allocation4 [shape = 'u8[131072]{0}', space=vmem, size = 0x20000, scoped, tag = 'input window, operand 1']
    #allocation5 [shape = 's32[2]{0}', space=sflag, size = 0x8, scoped, tag = 'scoped memory for tpu_custom_call.1']
    #allocation6 [shape = 'u8[32768]{0}', space=vmem, size = 0x8000, scoped, tag = 'input window, operand 2, single buffered']
    #allocation7 [shape = 'u8[32768]{0}', space=vmem, size = 0x8000, scoped, tag = 'input window, operand 3, single buffered']
    #allocation8 [shape = 's32[1]{0}', space=sflag, size = 0x4, scoped, tag = 'scoped memory for tpu_custom_call.1']
    %9 = vsyncpa [#allocation3], 0
    %s10 = scalar_lea.sflag [#allocation3], 1
    %11 = vsyncpa %s10, 0
    %12 = vsyncpa [#allocation5], 0
    %s13 = scalar_lea.sflag [#allocation5], 1
    %14 = vsyncpa %s13, 0
    %15 = vsyncpa [#allocation8], 0
    loop: start=0, step=1, limit=4
    $region2: #{tpu_custom_call.1} parent=1 // loop_pre_header
      _
    $region3: #{tpu_custom_call.1} parent=1 // loop_header
      %s17 = sphi 0, %s21
      %p18 = scmp.ge.s32.totalorder %s17, 4
      %s27 = sphi 0, %s29
      %s30 = sphi 0, %s27
      %s31 = sphi 0, %s30
      %s47 = sphi 0, %s31
      %s53 = sphi 0, %s55
      %s56 = sphi 0, %s53
      %s57 = sphi 0, %s56
      %s73 = sphi 0, %s57
      %s77 = sphi 0, %s77
      %s79 = sphi 0, %s77
      %s80 = sphi 0, %s79
      %s94 = sphi 0, %s80
      %s98 = sphi 0, %s98
      %s100 = sphi 0, %s98
      %s101 = sphi 0, %s100
      %s115 = sphi 0, %s101
      %s121 = sphi 0, %s123
      %s124 = sphi 0, %s121
      %s125 = sphi 0, %s124
      %s141 = sphi 0, %s125
    $region4: #{tpu_custom_call.1} parent=1 // loop_header_branch
      %20 = sbr.rel (%p18) target = $region8
    $region5: #{tpu_custom_call.1} parent=1 // loop_body
      %s22 = ssub.s32 %s17, 1
      %s23 = ssub.s32 %s17, 2
      %s24 = sadd.s32 %s17, 1
      %s25 = ssub.s32 %s17, %s24
      %p26 = scmp.eq.s32.totalorder %s25, 0
      %s28 = sadd.s32 %s27, 1
      %s29 = scalar_select %p26, %s27, %s28
      %p32 = pneg %p26
      %p33 = scmp.eq.s32.totalorder %s17, 1
      %p34 = por %p32, %p33
      %p35 = scmp.ne.s32.totalorder %s27, %s30
      %p36 = scmp.eq.s32.totalorder %s17, 0
      %p37 = por %p35, %p36
      %p38 = scmp.ne.s32.totalorder %s27, %s30
      %p39 = scmp.eq.s32.totalorder %s22, 1
      %p40 = por %p38, %p39
      %p41 = scmp.ne.s32.totalorder %s30, %s31
      %p42 = scmp.eq.s32.totalorder %s22, 0
      %p43 = por %p41, %p42
      %p44 = scmp.ne.s32.totalorder %s30, %s31
      %p45 = scmp.eq.s32.totalorder %s23, 1
      %p46 = por %p44, %p45
      %p48 = scmp.ne.s32.totalorder %s31, %s47
      %p49 = scmp.eq.s32.totalorder %s23, 0
      %p50 = por %p48, %p49
      %s51 = ssub.s32 %s17, %s24
      %p52 = scmp.eq.s32.totalorder %s51, 0
      %s54 = sadd.s32 %s53, 1
      %s55 = scalar_select %p52, %s53, %s54
      %p58 = pneg %p52
      %p59 = scmp.eq.s32.totalorder %s17, 1
      %p60 = por %p58, %p59
      %p61 = scmp.ne.s32.totalorder %s53, %s56
      %p62 = scmp.eq.s32.totalorder %s17, 0
      %p63 = por %p61, %p62
      %p64 = scmp.ne.s32.totalorder %s53, %s56
      %p65 = scmp.eq.s32.totalorder %s22, 1
      %p66 = por %p64, %p65
      %p67 = scmp.ne.s32.totalorder %s56, %s57
      %p68 = scmp.eq.s32.totalorder %s22, 0
      %p69 = por %p67, %p68
      %p70 = scmp.ne.s32.totalorder %s56, %s57
      %p71 = scmp.eq.s32.totalorder %s23, 1
      %p72 = por %p70, %p71
      %p74 = scmp.ne.s32.totalorder %s57, %s73
      %p75 = scmp.eq.s32.totalorder %s23, 0
      %p76 = por %p74, %p75
      %s78 = sadd.s32 %s77, 1
      %p81 = scmp.eq.s32.totalorder %s17, 1
      %p82 = scmp.ne.s32.totalorder %s77, %s79
      %p83 = scmp.eq.s32.totalorder %s17, 0
      %p84 = por %p82, %p83
      %p85 = scmp.ne.s32.totalorder %s77, %s79
      %p86 = scmp.eq.s32.totalorder %s22, 1
      %p87 = por %p85, %p86
      %p88 = scmp.ne.s32.totalorder %s79, %s80
      %p89 = scmp.eq.s32.totalorder %s22, 0
      %p90 = por %p88, %p89
      %p91 = scmp.ne.s32.totalorder %s79, %s80
      %p92 = scmp.eq.s32.totalorder %s23, 1
      %p93 = por %p91, %p92
      %p95 = scmp.ne.s32.totalorder %s80, %s94
      %p96 = scmp.eq.s32.totalorder %s23, 0
      %p97 = por %p95, %p96
      %s99 = sadd.s32 %s98, 1
      %p102 = scmp.eq.s32.totalorder %s17, 1
      %p103 = scmp.ne.s32.totalorder %s98, %s100
      %p104 = scmp.eq.s32.totalorder %s17, 0
      %p105 = por %p103, %p104
      %p106 = scmp.ne.s32.totalorder %s98, %s100
      %p107 = scmp.eq.s32.totalorder %s22, 1
      %p108 = por %p106, %p107
      %p109 = scmp.ne.s32.totalorder %s100, %s101
      %p110 = scmp.eq.s32.totalorder %s22, 0
      %p111 = por %p109, %p110
      %p112 = scmp.ne.s32.totalorder %s100, %s101
      %p113 = scmp.eq.s32.totalorder %s23, 1
      %p114 = por %p112, %p113
      %p116 = scmp.ne.s32.totalorder %s101, %s115
      %p117 = scmp.eq.s32.totalorder %s23, 0
      %p118 = por %p116, %p117
      %s119 = ssub.s32 %s17, %s24
      %p120 = scmp.eq.s32.totalorder %s119, 0
      %s122 = sadd.s32 %s121, 1
      %s123 = scalar_select %p120, %s121, %s122
      %p126 = pneg %p120
      %p127 = scmp.eq.s32.totalorder %s17, 1
      %p128 = por %p126, %p127
      %p129 = scmp.ne.s32.totalorder %s121, %s124
      %p130 = scmp.eq.s32.totalorder %s17, 0
      %p131 = por %p129, %p130
      %p132 = scmp.ne.s32.totalorder %s121, %s124
      %p133 = scmp.eq.s32.totalorder %s22, 1
      %p134 = por %p132, %p133
      %p135 = scmp.ne.s32.totalorder %s124, %s125
      %p136 = scmp.eq.s32.totalorder %s22, 0
      %p137 = por %p135, %p136
      %p138 = scmp.ne.s32.totalorder %s124, %s125
      %p139 = scmp.eq.s32.totalorder %s23, 1
      %p140 = por %p138, %p139
      %p142 = scmp.ne.s32.totalorder %s125, %s141
      %p143 = scmp.eq.s32.totalorder %s23, 0
      %p144 = por %p142, %p143
      %p145 = scmp.le.s32.totalorder 1, %s17
      %p146 = scmp.lt.s32.totalorder %s17, 3
      %p147 = pnand %p145, %p146
      %p148 = pneg %p147
      // Predicated region
      $region9: #{tpu_custom_call.1} parent=5 // pred_check
        _
      $region10: #{tpu_custom_call.1} parent=5 // pred_check_branch
        %150 = sbr.rel (%p147) target = $region12
      $region11: #{tpu_custom_call.1} parent=5 // pred_region
        %s151 = ssub.s32 %s17, 1
        // Predicated region
        $region13: #{tpu_custom_call.1} parent=11 // pred_check
          %p152 = pneg %p90
        $region14: #{tpu_custom_call.1} parent=11 // pred_check_branch
          %154 = sbr.rel (%p152) target = $region16
        $region15: #{tpu_custom_call.1} parent=11 // pred_region
          %s156 = ssub.s32 1024, 1024
          %157 = vsyncadd [#allocation5], %s156
          %s158 = sshll.u32 [#allocation6], 4
          %s159 = int_to_ptr.vmem [resolvable:$true] %s158
          %164 = dma.hbm_to_vmem [thread:$0]  %s2, 1024, %s159, [#allocation5], 128, 128, 8
        $region16: #{tpu_custom_call.1} parent=11 // pred_fallthru
          _
        // Predicated region
        $region17: #{tpu_custom_call.1} parent=11 // pred_check
          %p165 = pneg %p111
        $region18: #{tpu_custom_call.1} parent=11 // pred_check_branch
          %167 = sbr.rel (%p165) target = $region20
        $region19: #{tpu_custom_call.1} parent=11 // pred_region
          %s169 = ssub.s32 1024, 1024
          %170 = vsyncadd [#allocation8], %s169
          %s171 = sshll.u32 [#allocation7], 4
          %s172 = int_to_ptr.vmem [resolvable:$true] %s171
          %177 = dma.hbm_to_vmem [thread:$0]  %s3, 1024, %s172, [#allocation8], 128, 128, 8
        $region20: #{tpu_custom_call.1} parent=11 // pred_fallthru
          _
      $region12: #{tpu_custom_call.1} parent=5 // pred_fallthru
        _
      %p178 = scmp.lt.s32.totalorder %s17, 2
      // Predicated region
      $region21: #{tpu_custom_call.1} parent=5 // pred_check
        %p179 = pneg %p178
      $region22: #{tpu_custom_call.1} parent=5 // pred_check_branch
        %181 = sbr.rel (%p179) target = $region24
      $region23: #{tpu_custom_call.1} parent=5 // pred_region
        // Predicated region
        $region25: #{tpu_custom_call.1} parent=23 // pred_check
          %p182 = pneg %p37
        $region26: #{tpu_custom_call.1} parent=23 // pred_check_branch
          %184 = sbr.rel (%p182) target = $region28
        $region27: #{tpu_custom_call.1} parent=23 // pred_region
          %s185 = sand.u32 %s27, 1
          %s186 = scalar_lea.sflag [#allocation3], %s185
          %s187 = sand.u32 %s27, 1
          %s188 = smul.addr %s187, 128
          %s189 = scalar_lea.vmem [#allocation2], %s188
          %s191 = ssub.s32 2048, 2048
          %192 = vsyncadd %s186, %s191
          %s193 = smul.addr %s17, 32
          %s194 = smul.addr %s193, 64
          %s195 = scalar_lea.hbm %s0, %s194
          %s196 = sshll.u32 %s189, 4
          %s197 = int_to_ptr.vmem [resolvable:$true] %s196
          %202 = dma.hbm_to_vmem [thread:$0]  %s195, 2048, %s197, %s186, 64, 64, 4
        $region28: #{tpu_custom_call.1} parent=23 // pred_fallthru
          _
        // Predicated region
        $region29: #{tpu_custom_call.1} parent=23 // pred_check
          %p203 = pneg %p63
        $region30: #{tpu_custom_call.1} parent=23 // pred_check_branch
          %205 = sbr.rel (%p203) target = $region32
        $region31: #{tpu_custom_call.1} parent=23 // pred_region
          %s206 = sand.u32 %s17, 1
          %s207 = scalar_lea.sflag [#allocation5], %s206
          %s208 = sand.u32 %s53, 1
          %s209 = smul.addr %s208, 128
          %s210 = scalar_lea.vmem [#allocation4], %s209
          %s212 = ssub.s32 2048, 2048
          %213 = vsyncadd %s207, %s212
          %s214 = smul.addr %s17, 32
          %s215 = smul.addr %s214, 64
          %s216 = scalar_lea.hbm %s1, %s215
          %s217 = sshll.u32 %s210, 4
          %s218 = int_to_ptr.vmem [resolvable:$true] %s217
          %223 = dma.hbm_to_vmem [thread:$0]  %s216, 2048, %s218, %s207, 64, 64, 4
        $region32: #{tpu_custom_call.1} parent=23 // pred_fallthru
          _
      $region24: #{tpu_custom_call.1} parent=5 // pred_fallthru
        _
      %p224 = scmp.le.s32.totalorder 1, %s17
      %p225 = scmp.lt.s32.totalorder %s17, 3
      %p226 = pnand %p224, %p225
      %p227 = pneg %p226
      // Predicated region
      $region33: #{tpu_custom_call.1} parent=5 // pred_check
        _
      $region34: #{tpu_custom_call.1} parent=5 // pred_check_branch
        %229 = sbr.rel (%p226) target = $region36
      $region35: #{tpu_custom_call.1} parent=5 // pred_region
        %s230 = ssub.s32 %s17, 1
        %s231 = sand.u32 %s30, 1
        %s232 = scalar_lea.sflag [#allocation3], %s231
        %s233 = sand.u32 %s30, 1
        %s234 = smul.addr %s233, 128
        %s235 = scalar_lea.vmem [#allocation2], %s234
        // Predicated region
        $region37: #{tpu_custom_call.1} parent=35 // pred_check
          %p236 = pneg %p43
        $region38: #{tpu_custom_call.1} parent=35 // pred_check_branch
          %238 = sbr.rel (%p236) target = $region40
        $region39: #{tpu_custom_call.1} parent=35 // pred_region
          %239 = dma.done %s232, 2048
        $region40: #{tpu_custom_call.1} parent=35 // pred_fallthru
          _
        %s240 = sand.u32 %s22, 1
        %s241 = scalar_lea.sflag [#allocation5], %s240
        %s242 = sand.u32 %s56, 1
        %s243 = smul.addr %s242, 128
        %s244 = scalar_lea.vmem [#allocation4], %s243
        // Predicated region
        $region41: #{tpu_custom_call.1} parent=35 // pred_check
          %p245 = pneg %p69
        $region42: #{tpu_custom_call.1} parent=35 // pred_check_branch
          %247 = sbr.rel (%p245) target = $region44
        $region43: #{tpu_custom_call.1} parent=35 // pred_region
          %248 = dma.done %s241, 2048
        $region44: #{tpu_custom_call.1} parent=35 // pred_fallthru
          _
        // Predicated region
        $region45: #{tpu_custom_call.1} parent=35 // pred_check
          %p249 = pneg %p90
        $region46: #{tpu_custom_call.1} parent=35 // pred_check_branch
          %251 = sbr.rel (%p249) target = $region48
        $region47: #{tpu_custom_call.1} parent=35 // pred_region
          %252 = dma.done [#allocation5], 1024
        $region48: #{tpu_custom_call.1} parent=35 // pred_fallthru
          _
        // Predicated region
        $region49: #{tpu_custom_call.1} parent=35 // pred_check
          %p253 = pneg %p111
        $region50: #{tpu_custom_call.1} parent=35 // pred_check_branch
          %255 = sbr.rel (%p253) target = $region52
        $region51: #{tpu_custom_call.1} parent=35 // pred_region
          %256 = dma.done [#allocation8], 1024
        $region52: #{tpu_custom_call.1} parent=35 // pred_fallthru
          _
        %s257 = sand.u32 %s30, 1
        %s258 = scalar_lea.sflag [#allocation3], %s257
        %s259 = sand.u32 %s30, 1
        %s260 = smul.addr %s259, 128
        %s261 = scalar_lea.vmem [#allocation2], %s260
        %p262 = pneg %p43
        %p263 = pneg %p40
        %s264 = sand.u32 %s22, 1
        %s265 = scalar_lea.sflag [#allocation5], %s264
        %s266 = sand.u32 %s56, 1
        %s267 = smul.addr %s266, 128
        %s268 = scalar_lea.vmem [#allocation4], %s267
        %p269 = pneg %p69
        %p270 = pneg %p66
        %p271 = pneg %p90
        %p272 = pneg %p87
        %p273 = pneg %p111
        %p274 = pneg %p108
        %p275 = pneg %p137
        %p276 = pneg %p134
        %p277 = scmp.lt.s32.totalorder %s22, 1
        %s278 = scalar_select %p277, %s22, 1
        %s279 = smul.addr %s278, 32
        %s280 = smul.addr %s279, 8
        %s281 = scalar_lea.vmem %s4, %s280
        %p282 = scmp.lt.s32.totalorder %s22, 1
        %s283 = scalar_select %p282, %s22, 1
        %s284 = smul.addr %s283, 32
        %s285 = smul.addr %s284, 8
        %s286 = scalar_lea.vmem %s4, %s285
        %v288 = vld [vmem:[%s235] sm:$0xf]
        %v289 = vld [vmem:[%s235 + $0x4] sm:$0xf]
        %v290 = vld [vmem:[%s235 + $0x8] sm:$0xf]
        %v291 = vld [vmem:[%s235 + $0xc] sm:$0xf]
        %v292 = vld [vmem:[%s235 + $0x10] sm:$0xf]
        %v293 = vld [vmem:[%s235 + $0x14] sm:$0xf]
        %v294 = vld [vmem:[%s235 + $0x18] sm:$0xf]
        %v295 = vld [vmem:[%s235 + $0x1c] sm:$0xf]
        %v296 = vld [vmem:[%s235 + $0x20] sm:$0xf]
        %v297 = vld [vmem:[%s235 + $0x24] sm:$0xf]
        %v298 = vld [vmem:[%s235 + $0x28] sm:$0xf]
        %v299 = vld [vmem:[%s235 + $0x2c] sm:$0xf]
        %v300 = vld [vmem:[%s235 + $0x30] sm:$0xf]
        %v301 = vld [vmem:[%s235 + $0x34] sm:$0xf]
        %v302 = vld [vmem:[%s235 + $0x38] sm:$0xf]
        %v303 = vld [vmem:[%s235 + $0x3c] sm:$0xf]
        %v304 = vld [vmem:[%s235 + $0x40] sm:$0xf]
        %v305 = vld [vmem:[%s235 + $0x44] sm:$0xf]
        %v306 = vld [vmem:[%s235 + $0x48] sm:$0xf]
        %v307 = vld [vmem:[%s235 + $0x4c] sm:$0xf]
        %v308 = vld [vmem:[%s235 + $0x50] sm:$0xf]
        %v309 = vld [vmem:[%s235 + $0x54] sm:$0xf]
        %v310 = vld [vmem:[%s235 + $0x58] sm:$0xf]
        %v311 = vld [vmem:[%s235 + $0x5c] sm:$0xf]
        %v312 = vld [vmem:[%s235 + $0x60] sm:$0xf]
        %v313 = vld [vmem:[%s235 + $0x64] sm:$0xf]
        %v314 = vld [vmem:[%s235 + $0x68] sm:$0xf]
        %v315 = vld [vmem:[%s235 + $0x6c] sm:$0xf]
        %v316 = vld [vmem:[%s235 + $0x70] sm:$0xf]
        %v317 = vld [vmem:[%s235 + $0x74] sm:$0xf]
        %v318 = vld [vmem:[%s235 + $0x78] sm:$0xf]
        %v319 = vld [vmem:[%s235 + $0x7c] sm:$0xf]
        %v320 = vld [vmem:[%s244] sm:$0xf]
        %v321 = vld [vmem:[%s244 + $0x4] sm:$0xf]
        %v322 = vld [vmem:[%s244 + $0x8] sm:$0xf]
        %v323 = vld [vmem:[%s244 + $0xc] sm:$0xf]
        %v324 = vld [vmem:[%s244 + $0x10] sm:$0xf]
        %v325 = vld [vmem:[%s244 + $0x14] sm:$0xf]
        %v326 = vld [vmem:[%s244 + $0x18] sm:$0xf]
        %v327 = vld [vmem:[%s244 + $0x1c] sm:$0xf]
        %v328 = vld [vmem:[%s244 + $0x20] sm:$0xf]
        %v329 = vld [vmem:[%s244 + $0x24] sm:$0xf]
        %v330 = vld [vmem:[%s244 + $0x28] sm:$0xf]
        %v331 = vld [vmem:[%s244 + $0x2c] sm:$0xf]
        %v332 = vld [vmem:[%s244 + $0x30] sm:$0xf]
        %v333 = vld [vmem:[%s244 + $0x34] sm:$0xf]
        %v334 = vld [vmem:[%s244 + $0x38] sm:$0xf]
        %v335 = vld [vmem:[%s244 + $0x3c] sm:$0xf]
        %v336 = vld [vmem:[%s244 + $0x40] sm:$0xf]
        %v337 = vld [vmem:[%s244 + $0x44] sm:$0xf]
        %v338 = vld [vmem:[%s244 + $0x48] sm:$0xf]
        %v339 = vld [vmem:[%s244 + $0x4c] sm:$0xf]
        %v340 = vld [vmem:[%s244 + $0x50] sm:$0xf]
        %v341 = vld [vmem:[%s244 + $0x54] sm:$0xf]
        %v342 = vld [vmem:[%s244 + $0x58] sm:$0xf]
        %v343 = vld [vmem:[%s244 + $0x5c] sm:$0xf]
        %v344 = vld [vmem:[%s244 + $0x60] sm:$0xf]
        %v345 = vld [vmem:[%s244 + $0x64] sm:$0xf]
        %v346 = vld [vmem:[%s244 + $0x68] sm:$0xf]
        %v347 = vld [vmem:[%s244 + $0x6c] sm:$0xf]
        %v348 = vld [vmem:[%s244 + $0x70] sm:$0xf]
        %v349 = vld [vmem:[%s244 + $0x74] sm:$0xf]
        %v350 = vld [vmem:[%s244 + $0x78] sm:$0xf]
        %v351 = vld [vmem:[%s244 + $0x7c] sm:$0xf]
        %v360 = vunpack.c.l.b16 %v288
        %v361 = vunpack.c.l.b16 %v289
        %v362 = vunpack.c.l.b16 %v290
        %v363 = vunpack.c.l.b16 %v291
        %v364 = vunpack.c.l.b16 %v292
        %v365 = vunpack.c.l.b16 %v293
        %v366 = vunpack.c.l.b16 %v294
        %v367 = vunpack.c.l.b16 %v295
        %v368 = vpack.c.b16 %v361, %v360
        %v369 = vpack.c.b16 %v363, %v362
        %v370 = vpack.c.b16 %v365, %v364
        %v371 = vpack.c.b16 %v367, %v366
        %v380 = vunpack.c.l.b16 %v320
        %v381 = vunpack.c.l.b16 %v321
        %v382 = vunpack.c.l.b16 %v322
        %v383 = vunpack.c.l.b16 %v323
        %v384 = vunpack.c.l.b16 %v324
        %v385 = vunpack.c.l.b16 %v325
        %v386 = vunpack.c.l.b16 %v326
        %v387 = vunpack.c.l.b16 %v327
        %v388 = vpack.c.b16 %v381, %v380
        %v389 = vpack.c.b16 %v383, %v382
        %v390 = vpack.c.b16 %v385, %v384
        %v391 = vpack.c.b16 %v387, %v386
        %vm392 = vcmask 523264
        %v394 = vsel %vm392, %v368, 0
        %v397 = vsel %vm392, %v369, 0
        %v400 = vsel %vm392, %v370, 0
        %v403 = vsel %vm392, %v371, 0
        %v406 = vsel %vm392, %v388, 0
        %v409 = vsel %vm392, %v389, 0
        %v412 = vsel %vm392, %v390, 0
        %v415 = vsel %vm392, %v391, 0
        %417 = vmatprep.subr.bf16.mxu0 0
        %418 = vmatpush1.bf16.xpose.msra.mxu0 %v406
        %419 = vmatprep.subr.bf16.mxu0 0
        %420 = vmatpush1.bf16.xpose.msra.mxu0 %v409
        %421 = vmatprep.subr.bf16.mxu0 0
        %422 = vmatpush1.bf16.xpose.msra.mxu0 %v412
        %423 = vmatprep.subr.bf16.mxu0 0
        %424 = vmatpush1.bf16.xpose.msra.mxu0 %v415
        %425 = vmatprep.subr.bf16.mxu0 0
        %426 = vmatpush1.bf16.xpose.msra.mxu0 0
        %427 = vmatprep.subr.bf16.mxu0 0
        %428 = vmatpush1.bf16.xpose.msra.mxu0 0
        %429 = vmatprep.subr.bf16.mxu0 0
        %430 = vmatpush1.bf16.xpose.msra.mxu0 0
        %431 = vmatprep.subr.bf16.mxu0 0
        %432 = vmatpush1.bf16.xpose.msra.mxu0 0
        %433 = vmatprep.subr.bf16.mxu0 0
        %434 = vmatpush1.bf16.xpose.msra.mxu0 0
        %435 = vmatprep.subr.bf16.mxu0 0
        %436 = vmatpush1.bf16.xpose.msra.mxu0 0
        %437 = vmatprep.subr.bf16.mxu0 0
        %438 = vmatpush1.bf16.xpose.msra.mxu0 0
        %439 = vmatprep.subr.bf16.mxu0 0
        %440 = vmatpush1.bf16.xpose.msra.mxu0 0
        %441 = vmatprep.subr.bf16.mxu0 0
        %442 = vmatpush1.bf16.xpose.msra.mxu0 0
        %443 = vmatprep.subr.bf16.mxu0 0
        %444 = vmatpush1.bf16.xpose.msra.mxu0 0
        %445 = vmatprep.subr.bf16.mxu0 0
        %446 = vmatpush1.bf16.xpose.msra.mxu0 0
        %447 = vmatprep.subr.bf16.mxu0 0
        %448 = vmatpush1.bf16.xpose.msra.mxu0 0
        %449 = vmatprep.mubr.bf16.mxu0 0
        %450 = vmatmul.mubr.bf16.gmra.mrb[0].mxu0 %v394
        %v451 = vpop.f32.mrb[0].mxu0
        %v452 = vadd.f32 0.0, %v451
        %v453 = vpop.f32.mrb[0].mxu0
        %v454 = vpop.f32.mrb[0].mxu0
        %v455 = vadd.f32 0.0, %v454
        %v456 = vpop.f32.mrb[0].mxu0
        %457 = vmatprep.mubr.bf16.mxu0 0
        %458 = vmatmul.mubr.bf16.gmra.mrb[0].mxu0 %v397
        %v459 = vpop.f32.mrb[0].mxu0
        %v460 = vadd.f32 0.0, %v459
        %v461 = vpop.f32.mrb[0].mxu0
        %v462 = vpop.f32.mrb[0].mxu0
        %v463 = vadd.f32 0.0, %v462
        %v464 = vpop.f32.mrb[0].mxu0
        %465 = vmatprep.mubr.bf16.mxu0 0
        %466 = vmatmul.mubr.bf16.gmra.mrb[0].mxu0 %v400
        %v467 = vpop.f32.mrb[0].mxu0
        %v468 = vadd.f32 0.0, %v467
        %v469 = vpop.f32.mrb[0].mxu0
        %v470 = vpop.f32.mrb[0].mxu0
        %v471 = vadd.f32 0.0, %v470
        %v472 = vpop.f32.mrb[0].mxu0
        %473 = vmatprep.mubr.bf16.mxu0 0
        %474 = vmatmul.mubr.bf16.gmra.mrb[0].mxu0 %v403
        %v475 = vpop.f32.mrb[0].mxu0
        %v476 = vadd.f32 0.0, %v475
        %v477 = vpop.f32.mrb[0].mxu0
        %v478 = vpop.f32.mrb[0].mxu0
        %v479 = vadd.f32 0.0, %v478
        %v480 = vpop.f32.mrb[0].mxu0
        %481 = vdwg.mxu0
        %v490 = vunpack.c.l.b16 %v296
        %v491 = vunpack.c.l.b16 %v297
        %v492 = vunpack.c.l.b16 %v298
        %v493 = vunpack.c.l.b16 %v299
        %v494 = vunpack.c.l.b16 %v300
        %v495 = vunpack.c.l.b16 %v301
        %v496 = vunpack.c.l.b16 %v302
        %v497 = vunpack.c.l.b16 %v303
        %v498 = vpack.c.b16 %v491, %v490
        %v499 = vpack.c.b16 %v493, %v492
        %v500 = vpack.c.b16 %v495, %v494
        %v501 = vpack.c.b16 %v497, %v496
        %v510 = vunpack.c.l.b16 %v328
        %v511 = vunpack.c.l.b16 %v329
        %v512 = vunpack.c.l.b16 %v330
        %v513 = vunpack.c.l.b16 %v331
        %v514 = vunpack.c.l.b16 %v332
        %v515 = vunpack.c.l.b16 %v333
        %v516 = vunpack.c.l.b16 %v334
        %v517 = vunpack.c.l.b16 %v335
        %v518 = vpack.c.b16 %v511, %v510
        %v519 = vpack.c.b16 %v513, %v512
        %v520 = vpack.c.b16 %v515, %v514
        %v521 = vpack.c.b16 %v517, %v516
        %v523 = vsel %vm392, %v498, 0
        %v526 = vsel %vm392, %v499, 0
        %v529 = vsel %vm392, %v500, 0
        %v532 = vsel %vm392, %v501, 0
        %v535 = vsel %vm392, %v518, 0
        %v538 = vsel %vm392, %v519, 0
        %v541 = vsel %vm392, %v520, 0
        %v544 = vsel %vm392, %v521, 0
        %546 = vmatprep.subr.bf16.mxu0 0
        %547 = vmatpush1.bf16.xpose.msra.mxu0 %v535
        %548 = vmatprep.subr.bf16.mxu0 0
        %549 = vmatpush1.bf16.xpose.msra.mxu0 %v538
        %550 = vmatprep.subr.bf16.mxu0 0
        %551 = vmatpush1.bf16.xpose.msra.mxu0 %v541
        %552 = vmatprep.subr.bf16.mxu0 0
        %553 = vmatpush1.bf16.xpose.msra.mxu0 %v544
        %554 = vmatprep.subr.bf16.mxu0 0
        %555 = vmatpush1.bf16.xpose.msra.mxu0 0
        %556 = vmatprep.subr.bf16.mxu0 0
        %557 = vmatpush1.bf16.xpose.msra.mxu0 0
        %558 = vmatprep.subr.bf16.mxu0 0
        %559 = vmatpush1.bf16.xpose.msra.mxu0 0
        %560 = vmatprep.subr.bf16.mxu0 0
        %561 = vmatpush1.bf16.xpose.msra.mxu0 0
        %562 = vmatprep.subr.bf16.mxu0 0
        %563 = vmatpush1.bf16.xpose.msra.mxu0 0
        %564 = vmatprep.subr.bf16.mxu0 0
        %565 = vmatpush1.bf16.xpose.msra.mxu0 0
        %566 = vmatprep.subr.bf16.mxu0 0
        %567 = vmatpush1.bf16.xpose.msra.mxu0 0
        %568 = vmatprep.subr.bf16.mxu0 0
        %569 = vmatpush1.bf16.xpose.msra.mxu0 0
        %570 = vmatprep.subr.bf16.mxu0 0
        %571 = vmatpush1.bf16.xpose.msra.mxu0 0
        %572 = vmatprep.subr.bf16.mxu0 0
        %573 = vmatpush1.bf16.xpose.msra.mxu0 0
        %574 = vmatprep.subr.bf16.mxu0 0
        %575 = vmatpush1.bf16.xpose.msra.mxu0 0
        %576 = vmatprep.subr.bf16.mxu0 0
        %577 = vmatpush1.bf16.xpose.msra.mxu0 0
        %578 = vmatprep.mubr.bf16.mxu0 0
        %579 = vmatmul.mubr.bf16.gmra.mrb[0].mxu0 %v523
        %v580 = vpop.f32.mrb[0].mxu0
        %v581 = vadd.f32 0.0, %v580
        %v582 = vpop.f32.mrb[0].mxu0
        %v583 = vpop.f32.mrb[0].mxu0
        %v584 = vadd.f32 0.0, %v583
        %v585 = vpop.f32.mrb[0].mxu0
        %586 = vmatprep.mubr.bf16.mxu0 0
        %587 = vmatmul.mubr.bf16.gmra.mrb[0].mxu0 %v526
        %v588 = vpop.f32.mrb[0].mxu0
        %v589 = vadd.f32 0.0, %v588
        %v590 = vpop.f32.mrb[0].mxu0
        %v591 = vpop.f32.mrb[0].mxu0
        %v592 = vadd.f32 0.0, %v591
        %v593 = vpop.f32.mrb[0].mxu0
        %594 = vmatprep.mubr.bf16.mxu0 0
        %595 = vmatmul.mubr.bf16.gmra.mrb[0].mxu0 %v529
        %v596 = vpop.f32.mrb[0].mxu0
        %v597 = vadd.f32 0.0, %v596
        %v598 = vpop.f32.mrb[0].mxu0
        %v599 = vpop.f32.mrb[0].mxu0
        %v600 = vadd.f32 0.0, %v599
        %v601 = vpop.f32.mrb[0].mxu0
        %602 = vmatprep.mubr.bf16.mxu0 0
        %603 = vmatmul.mubr.bf16.gmra.mrb[0].mxu0 %v532
        %v604 = vpop.f32.mrb[0].mxu0
        %v605 = vadd.f32 0.0, %v604
        %v606 = vpop.f32.mrb[0].mxu0
        %v607 = vpop.f32.mrb[0].mxu0
        %v608 = vadd.f32 0.0, %v607
        %v609 = vpop.f32.mrb[0].mxu0
        %610 = vdwg.mxu0
        %v619 = vunpack.c.l.b16 %v304
        %v620 = vunpack.c.l.b16 %v305
        %v621 = vunpack.c.l.b16 %v306
        %v622 = vunpack.c.l.b16 %v307
        %v623 = vunpack.c.l.b16 %v308
        %v624 = vunpack.c.l.b16 %v309
        %v625 = vunpack.c.l.b16 %v310
        %v626 = vunpack.c.l.b16 %v311
        %v627 = vpack.c.b16 %v620, %v619
        %v628 = vpack.c.b16 %v622, %v621
        %v629 = vpack.c.b16 %v624, %v623
        %v630 = vpack.c.b16 %v626, %v625
        %v639 = vunpack.c.l.b16 %v336
        %v640 = vunpack.c.l.b16 %v337
        %v641 = vunpack.c.l.b16 %v338
        %v642 = vunpack.c.l.b16 %v339
        %v643 = vunpack.c.l.b16 %v340
        %v644 = vunpack.c.l.b16 %v341
        %v645 = vunpack.c.l.b16 %v342
        %v646 = vunpack.c.l.b16 %v343
        %v647 = vpack.c.b16 %v640, %v639
        %v648 = vpack.c.b16 %v642, %v641
        %v649 = vpack.c.b16 %v644, %v643
        %v650 = vpack.c.b16 %v646, %v645
        %v652 = vsel %vm392, %v627, 0
        %v655 = vsel %vm392, %v628, 0
        %v658 = vsel %vm392, %v629, 0
        %v661 = vsel %vm392, %v630, 0
        %v664 = vsel %vm392, %v647, 0
        %v667 = vsel %vm392, %v648, 0
        %v670 = vsel %vm392, %v649, 0
        %v673 = vsel %vm392, %v650, 0
        %675 = vmatprep.subr.bf16.mxu0 0
        %676 = vmatpush1.bf16.xpose.msra.mxu0 %v664
        %677 = vmatprep.subr.bf16.mxu0 0
        %678 = vmatpush1.bf16.xpose.msra.mxu0 %v667
        %679 = vmatprep.subr.bf16.mxu0 0
        %680 = vmatpush1.bf16.xpose.msra.mxu0 %v670
        %681 = vmatprep.subr.bf16.mxu0 0
        %682 = vmatpush1.bf16.xpose.msra.mxu0 %v673
        %683 = vmatprep.subr.bf16.mxu0 0
        %684 = vmatpush1.bf16.xpose.msra.mxu0 0
        %685 = vmatprep.subr.bf16.mxu0 0
        %686 = vmatpush1.bf16.xpose.msra.mxu0 0
        %687 = vmatprep.subr.bf16.mxu0 0
        %688 = vmatpush1.bf16.xpose.msra.mxu0 0
        %689 = vmatprep.subr.bf16.mxu0 0
        %690 = vmatpush1.bf16.xpose.msra.mxu0 0
        %691 = vmatprep.subr.bf16.mxu0 0
        %692 = vmatpush1.bf16.xpose.msra.mxu0 0
        %693 = vmatprep.subr.bf16.mxu0 0
        %694 = vmatpush1.bf16.xpose.msra.mxu0 0
        %695 = vmatprep.subr.bf16.mxu0 0
        %696 = vmatpush1.bf16.xpose.msra.mxu0 0
        %697 = vmatprep.subr.bf16.mxu0 0
        %698 = vmatpush1.bf16.xpose.msra.mxu0 0
        %699 = vmatprep.subr.bf16.mxu0 0
        %700 = vmatpush1.bf16.xpose.msra.mxu0 0
        %701 = vmatprep.subr.bf16.mxu0 0
        %702 = vmatpush1.bf16.xpose.msra.mxu0 0
        %703 = vmatprep.subr.bf16.mxu0 0
        %704 = vmatpush1.bf16.xpose.msra.mxu0 0
        %705 = vmatprep.subr.bf16.mxu0 0
        %706 = vmatpush1.bf16.xpose.msra.mxu0 0
        %707 = vmatprep.mubr.bf16.mxu0 0
        %708 = vmatmul.mubr.bf16.gmra.mrb[0].mxu0 %v652
        %v709 = vpop.f32.mrb[0].mxu0
        %v710 = vadd.f32 0.0, %v709
        %v711 = vpop.f32.mrb[0].mxu0
        %v712 = vpop.f32.mrb[0].mxu0
        %v713 = vadd.f32 0.0, %v712
        %v714 = vpop.f32.mrb[0].mxu0
        %715 = vmatprep.mubr.bf16.mxu0 0
        %716 = vmatmul.mubr.bf16.gmra.mrb[0].mxu0 %v655
        %v717 = vpop.f32.mrb[0].mxu0
        %v718 = vadd.f32 0.0, %v717
        %v719 = vpop.f32.mrb[0].mxu0
        %v720 = vpop.f32.mrb[0].mxu0
        %v721 = vadd.f32 0.0, %v720
        %v722 = vpop.f32.mrb[0].mxu0
        %723 = vmatprep.mubr.bf16.mxu0 0
        %724 = vmatmul.mubr.bf16.gmra.mrb[0].mxu0 %v658
        %v725 = vpop.f32.mrb[0].mxu0
        %v726 = vadd.f32 0.0, %v725
        %v727 = vpop.f32.mrb[0].mxu0
        %v728 = vpop.f32.mrb[0].mxu0
        %v729 = vadd.f32 0.0, %v728
        %v730 = vpop.f32.mrb[0].mxu0
        %731 = vmatprep.mubr.bf16.mxu0 0
        %732 = vmatmul.mubr.bf16.gmra.mrb[0].mxu0 %v661
        %v733 = vpop.f32.mrb[0].mxu0
        %v734 = vadd.f32 0.0, %v733
        %v735 = vpop.f32.mrb[0].mxu0
        %v736 = vpop.f32.mrb[0].mxu0
        %v737 = vadd.f32 0.0, %v736
        %v738 = vpop.f32.mrb[0].mxu0
        %739 = vdwg.mxu0
        %v748 = vunpack.c.l.b16 %v312
        %v749 = vunpack.c.l.b16 %v313
        %v750 = vunpack.c.l.b16 %v314
        %v751 = vunpack.c.l.b16 %v315
        %v752 = vunpack.c.l.b16 %v316
        %v753 = vunpack.c.l.b16 %v317
        %v754 = vunpack.c.l.b16 %v318
        %v755 = vunpack.c.l.b16 %v319
        %v756 = vpack.c.b16 %v749, %v748
        %v757 = vpack.c.b16 %v751, %v750
        %v758 = vpack.c.b16 %v753, %v752
        %v759 = vpack.c.b16 %v755, %v754
        %v768 = vunpack.c.l.b16 %v344
        %v769 = vunpack.c.l.b16 %v345
        %v770 = vunpack.c.l.b16 %v346
        %v771 = vunpack.c.l.b16 %v347
        %v772 = vunpack.c.l.b16 %v348
        %v773 = vunpack.c.l.b16 %v349
        %v774 = vunpack.c.l.b16 %v350
        %v775 = vunpack.c.l.b16 %v351
        %v776 = vpack.c.b16 %v769, %v768
        %v777 = vpack.c.b16 %v771, %v770
        %v778 = vpack.c.b16 %v773, %v772
        %v779 = vpack.c.b16 %v775, %v774
        %v781 = vsel %vm392, %v756, 0
        %v784 = vsel %vm392, %v757, 0
        %v787 = vsel %vm392, %v758, 0
        %v790 = vsel %vm392, %v759, 0
        %v793 = vsel %vm392, %v776, 0
        %v796 = vsel %vm392, %v777, 0
        %v799 = vsel %vm392, %v778, 0
        %v802 = vsel %vm392, %v779, 0
        %804 = vmatprep.subr.bf16.mxu0 0
        %805 = vmatpush1.bf16.xpose.msra.mxu0 %v793
        %806 = vmatprep.subr.bf16.mxu0 0
        %807 = vmatpush1.bf16.xpose.msra.mxu0 %v796
        %808 = vmatprep.subr.bf16.mxu0 0
        %809 = vmatpush1.bf16.xpose.msra.mxu0 %v799
        %810 = vmatprep.subr.bf16.mxu0 0
        %811 = vmatpush1.bf16.xpose.msra.mxu0 %v802
        %812 = vmatprep.subr.bf16.mxu0 0
        %813 = vmatpush1.bf16.xpose.msra.mxu0 0
        %814 = vmatprep.subr.bf16.mxu0 0
        %815 = vmatpush1.bf16.xpose.msra.mxu0 0
        %816 = vmatprep.subr.bf16.mxu0 0
        %817 = vmatpush1.bf16.xpose.msra.mxu0 0
        %818 = vmatprep.subr.bf16.mxu0 0
        %819 = vmatpush1.bf16.xpose.msra.mxu0 0
        %820 = vmatprep.subr.bf16.mxu0 0
        %821 = vmatpush1.bf16.xpose.msra.mxu0 0
        %822 = vmatprep.subr.bf16.mxu0 0
        %823 = vmatpush1.bf16.xpose.msra.mxu0 0
        %824 = vmatprep.subr.bf16.mxu0 0
        %825 = vmatpush1.bf16.xpose.msra.mxu0 0
        %826 = vmatprep.subr.bf16.mxu0 0
        %827 = vmatpush1.bf16.xpose.msra.mxu0 0
        %828 = vmatprep.subr.bf16.mxu0 0
        %829 = vmatpush1.bf16.xpose.msra.mxu0 0
        %830 = vmatprep.subr.bf16.mxu0 0
        %831 = vmatpush1.bf16.xpose.msra.mxu0 0
        %832 = vmatprep.subr.bf16.mxu0 0
        %833 = vmatpush1.bf16.xpose.msra.mxu0 0
        %834 = vmatprep.subr.bf16.mxu0 0
        %835 = vmatpush1.bf16.xpose.msra.mxu0 0
        %836 = vmatprep.mubr.bf16.mxu0 0
        %837 = vmatmul.mubr.bf16.gmra.mrb[0].mxu0 %v781
        %v838 = vpop.f32.mrb[0].mxu0
        %v839 = vadd.f32 0.0, %v838
        %v840 = vpop.f32.mrb[0].mxu0
        %v841 = vpop.f32.mrb[0].mxu0
        %v842 = vadd.f32 0.0, %v841
        %v843 = vpop.f32.mrb[0].mxu0
        %844 = vmatprep.mubr.bf16.mxu0 0
        %845 = vmatmul.mubr.bf16.gmra.mrb[0].mxu0 %v784
        %v846 = vpop.f32.mrb[0].mxu0
        %v847 = vadd.f32 0.0, %v846
        %v848 = vpop.f32.mrb[0].mxu0
        %v849 = vpop.f32.mrb[0].mxu0
        %v850 = vadd.f32 0.0, %v849
        %v851 = vpop.f32.mrb[0].mxu0
        %852 = vmatprep.mubr.bf16.mxu0 0
        %853 = vmatmul.mubr.bf16.gmra.mrb[0].mxu0 %v787
        %v854 = vpop.f32.mrb[0].mxu0
        %v855 = vadd.f32 0.0, %v854
        %v856 = vpop.f32.mrb[0].mxu0
        %v857 = vpop.f32.mrb[0].mxu0
        %v858 = vadd.f32 0.0, %v857
        %v859 = vpop.f32.mrb[0].mxu0
        %860 = vmatprep.mubr.bf16.mxu0 0
        %861 = vmatmul.mubr.bf16.gmra.mrb[0].mxu0 %v790
        %v862 = vpop.f32.mrb[0].mxu0
        %v863 = vadd.f32 0.0, %v862
        %v864 = vpop.f32.mrb[0].mxu0
        %v865 = vpop.f32.mrb[0].mxu0
        %v866 = vadd.f32 0.0, %v865
        %v867 = vpop.f32.mrb[0].mxu0
        %868 = vdwg.mxu0
        %v869 = vld [vmem:[#allocation6] sm:$0xff]
        %v870 = vld [vmem:[#allocation6 + $0x8] sm:$0xff]
        %v871 = vld [vmem:[#allocation6 + $0x10] sm:$0xff]
        %v872 = vld [vmem:[#allocation6 + $0x18] sm:$0xff]
        %v873 = vld [vmem:[#allocation6 + $0x20] sm:$0xff]
        %v874 = vld [vmem:[#allocation6 + $0x28] sm:$0xff]
        %v875 = vld [vmem:[#allocation6 + $0x30] sm:$0xff]
        %v876 = vld [vmem:[#allocation6 + $0x38] sm:$0xff]
        %v877 = vld [vmem:[#allocation7] sm:$0xff]
        %v878 = vld [vmem:[#allocation7 + $0x8] sm:$0xff]
        %v879 = vld [vmem:[#allocation7 + $0x10] sm:$0xff]
        %v880 = vld [vmem:[#allocation7 + $0x18] sm:$0xff]
        %v881 = vld [vmem:[#allocation7 + $0x20] sm:$0xff]
        %v882 = vld [vmem:[#allocation7 + $0x28] sm:$0xff]
        %v883 = vld [vmem:[#allocation7 + $0x30] sm:$0xff]
        %v884 = vld [vmem:[#allocation7 + $0x38] sm:$0xff]
        %v885 = vadd.f32 %v452, %v869
        %v886 = vadd.f32 %v455, %v870
        %v887 = vadd.f32 %v460, %v871
        %v888 = vadd.f32 %v463, %v872
        %v889 = vadd.f32 %v468, %v873
        %v890 = vadd.f32 %v471, %v874
        %v891 = vadd.f32 %v476, %v875
        %v892 = vadd.f32 %v479, %v876
        %v893 = vadd.f32 %v581, %v869
        %v894 = vadd.f32 %v584, %v870
        %v895 = vadd.f32 %v589, %v871
        %v896 = vadd.f32 %v592, %v872
        %v897 = vadd.f32 %v597, %v873
        %v898 = vadd.f32 %v600, %v874
        %v899 = vadd.f32 %v605, %v875
        %v900 = vadd.f32 %v608, %v876
        %v901 = vadd.f32 %v710, %v869
        %v902 = vadd.f32 %v713, %v870
        %v903 = vadd.f32 %v718, %v871
        %v904 = vadd.f32 %v721, %v872
        %v905 = vadd.f32 %v726, %v873
        %v906 = vadd.f32 %v729, %v874
        %v907 = vadd.f32 %v734, %v875
        %v908 = vadd.f32 %v737, %v876
        %v909 = vadd.f32 %v839, %v869
        %v910 = vadd.f32 %v842, %v870
        %v911 = vadd.f32 %v847, %v871
        %v912 = vadd.f32 %v850, %v872
        %v913 = vadd.f32 %v855, %v873
        %v914 = vadd.f32 %v858, %v874
        %v915 = vadd.f32 %v863, %v875
        %v916 = vadd.f32 %v866, %v876
        %v917 = vsel %vm392, %v885, -inf
        %918 = vmax.xlane.f32.xlu0 %v917
        %v919 = vpop.xlane.xlu0 %918
        %v920 = vsel %vm392, %v886, -inf
        %921 = vmax.xlane.f32.xlu0 %v920
        %v922 = vpop.xlane.xlu0 %921
        %v923 = vsel %vm392, %v887, -inf
        %924 = vmax.xlane.f32.xlu0 %v923
        %v925 = vpop.xlane.xlu0 %924
        %v926 = vsel %vm392, %v888, -inf
        %927 = vmax.xlane.f32.xlu0 %v926
        %v928 = vpop.xlane.xlu0 %927
        %v929 = vsel %vm392, %v889, -inf
        %930 = vmax.xlane.f32.xlu0 %v929
        %v931 = vpop.xlane.xlu0 %930
        %v932 = vsel %vm392, %v890, -inf
        %933 = vmax.xlane.f32.xlu0 %v932
        %v934 = vpop.xlane.xlu0 %933
        %v935 = vsel %vm392, %v891, -inf
        %936 = vmax.xlane.f32.xlu0 %v935
        %v937 = vpop.xlane.xlu0 %936
        %v938 = vsel %vm392, %v892, -inf
        %939 = vmax.xlane.f32.xlu0 %v938
        %v940 = vpop.xlane.xlu0 %939
        %v941 = vsel %vm392, %v893, -inf
        %942 = vmax.xlane.f32.xlu0 %v941
        %v943 = vpop.xlane.xlu0 %942
        %v944 = vsel %vm392, %v894, -inf
        %945 = vmax.xlane.f32.xlu0 %v944
        %v946 = vpop.xlane.xlu0 %945
        %v947 = vsel %vm392, %v895, -inf
        %948 = vmax.xlane.f32.xlu0 %v947
        %v949 = vpop.xlane.xlu0 %948
        %v950 = vsel %vm392, %v896, -inf
        %951 = vmax.xlane.f32.xlu0 %v950
        %v952 = vpop.xlane.xlu0 %951
        %v953 = vsel %vm392, %v897, -inf
        %954 = vmax.xlane.f32.xlu0 %v953
        %v955 = vpop.xlane.xlu0 %954
        %v956 = vsel %vm392, %v898, -inf
        %957 = vmax.xlane.f32.xlu0 %v956
        %v958 = vpop.xlane.xlu0 %957
        %v959 = vsel %vm392, %v899, -inf
        %960 = vmax.xlane.f32.xlu0 %v959
        %v961 = vpop.xlane.xlu0 %960
        %v962 = vsel %vm392, %v900, -inf
        %963 = vmax.xlane.f32.xlu0 %v962
        %v964 = vpop.xlane.xlu0 %963
        %v965 = vsel %vm392, %v901, -inf
        %966 = vmax.xlane.f32.xlu0 %v965
        %v967 = vpop.xlane.xlu0 %966
        %v968 = vsel %vm392, %v902, -inf
        %969 = vmax.xlane.f32.xlu0 %v968
        %v970 = vpop.xlane.xlu0 %969
        %v971 = vsel %vm392, %v903, -inf
        %972 = vmax.xlane.f32.xlu0 %v971
        %v973 = vpop.xlane.xlu0 %972
        %v974 = vsel %vm392, %v904, -inf
        %975 = vmax.xlane.f32.xlu0 %v974
        %v976 = vpop.xlane.xlu0 %975
        %v977 = vsel %vm392, %v905, -inf
        %978 = vmax.xlane.f32.xlu0 %v977
        %v979 = vpop.xlane.xlu0 %978
        %v980 = vsel %vm392, %v906, -inf
        %981 = vmax.xlane.f32.xlu0 %v980
        %v982 = vpop.xlane.xlu0 %981
        %v983 = vsel %vm392, %v907, -inf
        %984 = vmax.xlane.f32.xlu0 %v983
        %v985 = vpop.xlane.xlu0 %984
        %v986 = vsel %vm392, %v908, -inf
        %987 = vmax.xlane.f32.xlu0 %v986
        %v988 = vpop.xlane.xlu0 %987
        %v989 = vsel %vm392, %v909, -inf
        %990 = vmax.xlane.f32.xlu0 %v989
        %v991 = vpop.xlane.xlu0 %990
        %v992 = vsel %vm392, %v910, -inf
        %993 = vmax.xlane.f32.xlu0 %v992
        %v994 = vpop.xlane.xlu0 %993
        %v995 = vsel %vm392, %v911, -inf
        %996 = vmax.xlane.f32.xlu0 %v995
        %v997 = vpop.xlane.xlu0 %996
        %v998 = vsel %vm392, %v912, -inf
        %999 = vmax.xlane.f32.xlu0 %v998
        %v1000 = vpop.xlane.xlu0 %999
        %v1001 = vsel %vm392, %v913, -inf
        %1002 = vmax.xlane.f32.xlu0 %v1001
        %v1003 = vpop.xlane.xlu0 %1002
        %v1004 = vsel %vm392, %v914, -inf
        %1005 = vmax.xlane.f32.xlu0 %v1004
        %v1006 = vpop.xlane.xlu0 %1005
        %v1007 = vsel %vm392, %v915, -inf
        %1008 = vmax.xlane.f32.xlu0 %v1007
        %v1009 = vpop.xlane.xlu0 %1008
        %v1010 = vsel %vm392, %v916, -inf
        %1011 = vmax.xlane.f32.xlu0 %v1010
        %v1012 = vpop.xlane.xlu0 %1011
        %v1013 = vmul.f32 %v452, %v877
        %v1014 = vmul.f32 %v455, %v878
        %v1015 = vmul.f32 %v460, %v879
        %v1016 = vmul.f32 %v463, %v880
        %v1017 = vmul.f32 %v468, %v881
        %v1018 = vmul.f32 %v471, %v882
        %v1019 = vmul.f32 %v476, %v883
        %v1020 = vmul.f32 %v479, %v884
        %v1021 = vmul.f32 %v581, %v877
        %v1022 = vmul.f32 %v584, %v878
        %v1023 = vmul.f32 %v589, %v879
        %v1024 = vmul.f32 %v592, %v880
        %v1025 = vmul.f32 %v597, %v881
        %v1026 = vmul.f32 %v600, %v882
        %v1027 = vmul.f32 %v605, %v883
        %v1028 = vmul.f32 %v608, %v884
        %v1029 = vmul.f32 %v710, %v877
        %v1030 = vmul.f32 %v713, %v878
        %v1031 = vmul.f32 %v718, %v879
        %v1032 = vmul.f32 %v721, %v880
        %v1033 = vmul.f32 %v726, %v881
        %v1034 = vmul.f32 %v729, %v882
        %v1035 = vmul.f32 %v734, %v883
        %v1036 = vmul.f32 %v737, %v884
        %v1037 = vmul.f32 %v839, %v877
        %v1038 = vmul.f32 %v842, %v878
        %v1039 = vmul.f32 %v847, %v879
        %v1040 = vmul.f32 %v850, %v880
        %v1041 = vmul.f32 %v855, %v881
        %v1042 = vmul.f32 %v858, %v882
        %v1043 = vmul.f32 %v863, %v883
        %v1044 = vmul.f32 %v866, %v884
        %v1045 = vsel %vm392, %v1013, 0.0
        %1046 = vadd.xlane.f32.xlu0 %v1045
        %v1047 = vpop.xlane.xlu0 %1046
        %v1048 = vsel %vm392, %v1014, 0.0
        %1049 = vadd.xlane.f32.xlu0 %v1048
        %v1050 = vpop.xlane.xlu0 %1049
        %v1051 = vsel %vm392, %v1015, 0.0
        %1052 = vadd.xlane.f32.xlu0 %v1051
        %v1053 = vpop.xlane.xlu0 %1052
        %v1054 = vsel %vm392, %v1016, 0.0
        %1055 = vadd.xlane.f32.xlu0 %v1054
        %v1056 = vpop.xlane.xlu0 %1055
        %v1057 = vsel %vm392, %v1017, 0.0
        %1058 = vadd.xlane.f32.xlu0 %v1057
        %v1059 = vpop.xlane.xlu0 %1058
        %v1060 = vsel %vm392, %v1018, 0.0
        %1061 = vadd.xlane.f32.xlu0 %v1060
        %v1062 = vpop.xlane.xlu0 %1061
        %v1063 = vsel %vm392, %v1019, 0.0
        %1064 = vadd.xlane.f32.xlu0 %v1063
        %v1065 = vpop.xlane.xlu0 %1064
        %v1066 = vsel %vm392, %v1020, 0.0
        %1067 = vadd.xlane.f32.xlu0 %v1066
        %v1068 = vpop.xlane.xlu0 %1067
        %v1069 = vsel %vm392, %v1021, 0.0
        %1070 = vadd.xlane.f32.xlu0 %v1069
        %v1071 = vpop.xlane.xlu0 %1070
        %v1072 = vsel %vm392, %v1022, 0.0
        %1073 = vadd.xlane.f32.xlu0 %v1072
        %v1074 = vpop.xlane.xlu0 %1073
        %v1075 = vsel %vm392, %v1023, 0.0
        %1076 = vadd.xlane.f32.xlu0 %v1075
        %v1077 = vpop.xlane.xlu0 %1076
        %v1078 = vsel %vm392, %v1024, 0.0
        %1079 = vadd.xlane.f32.xlu0 %v1078
        %v1080 = vpop.xlane.xlu0 %1079
        %v1081 = vsel %vm392, %v1025, 0.0
        %1082 = vadd.xlane.f32.xlu0 %v1081
        %v1083 = vpop.xlane.xlu0 %1082
        %v1084 = vsel %vm392, %v1026, 0.0
        %1085 = vadd.xlane.f32.xlu0 %v1084
        %v1086 = vpop.xlane.xlu0 %1085
        %v1087 = vsel %vm392, %v1027, 0.0
        %1088 = vadd.xlane.f32.xlu0 %v1087
        %v1089 = vpop.xlane.xlu0 %1088
        %v1090 = vsel %vm392, %v1028, 0.0
        %1091 = vadd.xlane.f32.xlu0 %v1090
        %v1092 = vpop.xlane.xlu0 %1091
        %v1093 = vsel %vm392, %v1029, 0.0
        %1094 = vadd.xlane.f32.xlu0 %v1093
        %v1095 = vpop.xlane.xlu0 %1094
        %v1096 = vsel %vm392, %v1030, 0.0
        %1097 = vadd.xlane.f32.xlu0 %v1096
        %v1098 = vpop.xlane.xlu0 %1097
        %v1099 = vsel %vm392, %v1031, 0.0
        %1100 = vadd.xlane.f32.xlu0 %v1099
        %v1101 = vpop.xlane.xlu0 %1100
        %v1102 = vsel %vm392, %v1032, 0.0
        %1103 = vadd.xlane.f32.xlu0 %v1102
        %v1104 = vpop.xlane.xlu0 %1103
        %v1105 = vsel %vm392, %v1033, 0.0
        %1106 = vadd.xlane.f32.xlu0 %v1105
        %v1107 = vpop.xlane.xlu0 %1106
        %v1108 = vsel %vm392, %v1034, 0.0
        %1109 = vadd.xlane.f32.xlu0 %v1108
        %v1110 = vpop.xlane.xlu0 %1109
        %v1111 = vsel %vm392, %v1035, 0.0
        %1112 = vadd.xlane.f32.xlu0 %v1111
        %v1113 = vpop.xlane.xlu0 %1112
        %v1114 = vsel %vm392, %v1036, 0.0
        %1115 = vadd.xlane.f32.xlu0 %v1114
        %v1116 = vpop.xlane.xlu0 %1115
        %v1117 = vsel %vm392, %v1037, 0.0
        %1118 = vadd.xlane.f32.xlu0 %v1117
        %v1119 = vpop.xlane.xlu0 %1118
        %v1120 = vsel %vm392, %v1038, 0.0
        %1121 = vadd.xlane.f32.xlu0 %v1120
        %v1122 = vpop.xlane.xlu0 %1121
        %v1123 = vsel %vm392, %v1039, 0.0
        %1124 = vadd.xlane.f32.xlu0 %v1123
        %v1125 = vpop.xlane.xlu0 %1124
        %v1126 = vsel %vm392, %v1040, 0.0
        %1127 = vadd.xlane.f32.xlu0 %v1126
        %v1128 = vpop.xlane.xlu0 %1127
        %v1129 = vsel %vm392, %v1041, 0.0
        %1130 = vadd.xlane.f32.xlu0 %v1129
        %v1131 = vpop.xlane.xlu0 %1130
        %v1132 = vsel %vm392, %v1042, 0.0
        %1133 = vadd.xlane.f32.xlu0 %v1132
        %v1134 = vpop.xlane.xlu0 %1133
        %v1135 = vsel %vm392, %v1043, 0.0
        %1136 = vadd.xlane.f32.xlu0 %v1135
        %v1137 = vpop.xlane.xlu0 %1136
        %v1138 = vsel %vm392, %v1044, 0.0
        %1139 = vadd.xlane.f32.xlu0 %v1138
        %v1140 = vpop.xlane.xlu0 %1139
        %v1141 = vmul.f32 %v1047, 0.015625
        %v1142 = vmul.f32 %v1050, 0.015625
        %v1143 = vmul.f32 %v1053, 0.015625
        %v1144 = vmul.f32 %v1056, 0.015625
        %v1145 = vmul.f32 %v1059, 0.015625
        %v1146 = vmul.f32 %v1062, 0.015625
        %v1147 = vmul.f32 %v1065, 0.015625
        %v1148 = vmul.f32 %v1068, 0.015625
        %v1149 = vmul.f32 %v1071, 0.015625
        %v1150 = vmul.f32 %v1074, 0.015625
        %v1151 = vmul.f32 %v1077, 0.015625
        %v1152 = vmul.f32 %v1080, 0.015625
        %v1153 = vmul.f32 %v1083, 0.015625
        %v1154 = vmul.f32 %v1086, 0.015625
        %v1155 = vmul.f32 %v1089, 0.015625
        %v1156 = vmul.f32 %v1092, 0.015625
        %v1157 = vmul.f32 %v1095, 0.015625
        %v1158 = vmul.f32 %v1098, 0.015625
        %v1159 = vmul.f32 %v1101, 0.015625
        %v1160 = vmul.f32 %v1104, 0.015625
        %v1161 = vmul.f32 %v1107, 0.015625
        %v1162 = vmul.f32 %v1110, 0.015625
        %v1163 = vmul.f32 %v1113, 0.015625
        %v1164 = vmul.f32 %v1116, 0.015625
        %v1165 = vmul.f32 %v1119, 0.015625
        %v1166 = vmul.f32 %v1122, 0.015625
        %v1167 = vmul.f32 %v1125, 0.015625
        %v1168 = vmul.f32 %v1128, 0.015625
        %v1169 = vmul.f32 %v1131, 0.015625
        %v1170 = vmul.f32 %v1134, 0.015625
        %v1171 = vmul.f32 %v1137, 0.015625
        %v1172 = vmul.f32 %v1140, 0.015625
        %v1173 = vsub.f32 %v919, %v1141
        %v1174 = vsub.f32 %v922, %v1142
        %v1175 = vsub.f32 %v925, %v1143
        %v1176 = vsub.f32 %v928, %v1144
        %v1177 = vsub.f32 %v931, %v1145
        %v1178 = vsub.f32 %v934, %v1146
        %v1179 = vsub.f32 %v937, %v1147
        %v1180 = vsub.f32 %v940, %v1148
        %v1181 = vsub.f32 %v943, %v1149
        %v1182 = vsub.f32 %v946, %v1150
        %v1183 = vsub.f32 %v949, %v1151
        %v1184 = vsub.f32 %v952, %v1152
        %v1185 = vsub.f32 %v955, %v1153
        %v1186 = vsub.f32 %v958, %v1154
        %v1187 = vsub.f32 %v961, %v1155
        %v1188 = vsub.f32 %v964, %v1156
        %v1189 = vsub.f32 %v967, %v1157
        %v1190 = vsub.f32 %v970, %v1158
        %v1191 = vsub.f32 %v973, %v1159
        %v1192 = vsub.f32 %v976, %v1160
        %v1193 = vsub.f32 %v979, %v1161
        %v1194 = vsub.f32 %v982, %v1162
        %v1195 = vsub.f32 %v985, %v1163
        %v1196 = vsub.f32 %v988, %v1164
        %v1197 = vsub.f32 %v991, %v1165
        %v1198 = vsub.f32 %v994, %v1166
        %v1199 = vsub.f32 %v997, %v1167
        %v1200 = vsub.f32 %v1000, %v1168
        %v1201 = vsub.f32 %v1003, %v1169
        %v1202 = vsub.f32 %v1006, %v1170
        %v1203 = vsub.f32 %v1009, %v1171
        %v1204 = vsub.f32 %v1012, %v1172
        %vm1205 = vcmask 7168
        %1206 = vst.msk [vmem:[%s286] sm:$0xff] %vm1205, %v1173
        %1207 = vst.msk [vmem:[%s286 + $0x8] sm:$0xff] %vm1205, %v1174
        %1208 = vst.msk [vmem:[%s286 + $0x10] sm:$0xff] %vm1205, %v1175
        %1209 = vst.msk [vmem:[%s286 + $0x18] sm:$0xff] %vm1205, %v1176
        %1210 = vst.msk [vmem:[%s286 + $0x20] sm:$0xff] %vm1205, %v1177
        %1211 = vst.msk [vmem:[%s286 + $0x28] sm:$0xff] %vm1205, %v1178
        %1212 = vst.msk [vmem:[%s286 + $0x30] sm:$0xff] %vm1205, %v1179
        %1213 = vst.msk [vmem:[%s286 + $0x38] sm:$0xff] %vm1205, %v1180
        %1214 = vst.msk [vmem:[%s286 + $0x40] sm:$0xff] %vm1205, %v1181
        %1215 = vst.msk [vmem:[%s286 + $0x48] sm:$0xff] %vm1205, %v1182
        %1216 = vst.msk [vmem:[%s286 + $0x50] sm:$0xff] %vm1205, %v1183
        %1217 = vst.msk [vmem:[%s286 + $0x58] sm:$0xff] %vm1205, %v1184
        %1218 = vst.msk [vmem:[%s286 + $0x60] sm:$0xff] %vm1205, %v1185
        %1219 = vst.msk [vmem:[%s286 + $0x68] sm:$0xff] %vm1205, %v1186
        %1220 = vst.msk [vmem:[%s286 + $0x70] sm:$0xff] %vm1205, %v1187
        %1221 = vst.msk [vmem:[%s286 + $0x78] sm:$0xff] %vm1205, %v1188
        %1222 = vst.msk [vmem:[%s286 + $0x80] sm:$0xff] %vm1205, %v1189
        %1223 = vst.msk [vmem:[%s286 + $0x88] sm:$0xff] %vm1205, %v1190
        %1224 = vst.msk [vmem:[%s286 + $0x90] sm:$0xff] %vm1205, %v1191
        %1225 = vst.msk [vmem:[%s286 + $0x98] sm:$0xff] %vm1205, %v1192
        %1226 = vst.msk [vmem:[%s286 + $0xa0] sm:$0xff] %vm1205, %v1193
        %1227 = vst.msk [vmem:[%s286 + $0xa8] sm:$0xff] %vm1205, %v1194
        %1228 = vst.msk [vmem:[%s286 + $0xb0] sm:$0xff] %vm1205, %v1195
        %1229 = vst.msk [vmem:[%s286 + $0xb8] sm:$0xff] %vm1205, %v1196
        %1230 = vst.msk [vmem:[%s286 + $0xc0] sm:$0xff] %vm1205, %v1197
        %1231 = vst.msk [vmem:[%s286 + $0xc8] sm:$0xff] %vm1205, %v1198
        %1232 = vst.msk [vmem:[%s286 + $0xd0] sm:$0xff] %vm1205, %v1199
        %1233 = vst.msk [vmem:[%s286 + $0xd8] sm:$0xff] %vm1205, %v1200
        %1234 = vst.msk [vmem:[%s286 + $0xe0] sm:$0xff] %vm1205, %v1201
        %1235 = vst.msk [vmem:[%s286 + $0xe8] sm:$0xff] %vm1205, %v1202
        %1236 = vst.msk [vmem:[%s286 + $0xf0] sm:$0xff] %vm1205, %v1203
        %1237 = vst.msk [vmem:[%s286 + $0xf8] sm:$0xff] %vm1205, %v1204
        %p1238 = scmp.lt.s32.totalorder %s22, 1
        %s1239 = scalar_select %p1238, %s22, 1
        %s1240 = smul.addr %s1239, 32
        %s1241 = smul.addr %s1240, 8
        %s1242 = scalar_lea.vmem %s4, %s1241
        // Predicated region
        $region53: #{tpu_custom_call.1} parent=35 // pred_check
          %p1243 = pneg %p134
        $region54: #{tpu_custom_call.1} parent=35 // pred_check_branch
          %1245 = sbr.rel (%p1243) target = $region56
        $region55: #{tpu_custom_call.1} parent=35 // pred_region
          _
        $region56: #{tpu_custom_call.1} parent=35 // pred_fallthru
          _
      $region36: #{tpu_custom_call.1} parent=5 // pred_fallthru
        _
      %p1246 = scmp.le.s32.totalorder 2, %s17
      // Predicated region
      $region57: #{tpu_custom_call.1} parent=5 // pred_check
        %p1247 = pneg %p1246
      $region58: #{tpu_custom_call.1} parent=5 // pred_check_branch
        %1249 = sbr.rel (%p1247) target = $region60
      $region59: #{tpu_custom_call.1} parent=5 // pred_region
        %s1250 = ssub.s32 %s17, 2
        // Predicated region
        $region61: #{tpu_custom_call.1} parent=59 // pred_check
          %p1251 = pneg %p140
        $region62: #{tpu_custom_call.1} parent=59 // pred_check_branch
          %1253 = sbr.rel (%p1251) target = $region64
        $region63: #{tpu_custom_call.1} parent=59 // pred_region
          %p1254 = scmp.lt.s32.totalorder %s23, 1
          %s1255 = scalar_select %p1254, %s23, 1
          %s1256 = smul.addr %s1255, 32
          %s1257 = smul.addr %s1256, 8
          %s1258 = scalar_lea.vmem %s4, %s1257
        $region64: #{tpu_custom_call.1} parent=59 // pred_fallthru
          _
      $region60: #{tpu_custom_call.1} parent=5 // pred_fallthru
        _
    $region6: #{tpu_custom_call.1} parent=1 // loop_footer
      %s21 = sadd.s32 1, %s17
    $region7: #{tpu_custom_call.1} parent=1 // loop_footer_branch
      %16 = sbr.rel target = $region3
    $region8: #{tpu_custom_call.1} parent=1 // loop_exit
      _
    %1259 = vsyncpa [#allocation3], 1
    %s1260 = scalar_lea.sflag [#allocation3], 1
    %1261 = vsyncpa %s1260, 1
    %1262 = vsyncpa [#allocation5], 1
    %s1263 = scalar_lea.sflag [#allocation5], 1
    %1264 = vsyncpa %s1263, 1
    %1265 = vsyncpa [#allocation8], 1

</llo_original>
